<compile_context>
chip_gen: v6e
topology: v6e:2x2x1
jax: 0.10.0
libtpu: 0.0.40
codegen_flags: <defaults>
</compile_context>

<pallas_src>
import functools
import math

import jax
import jax.numpy as jnp
from jax import lax
from jax.experimental import pallas as pl
from jax.experimental.pallas import tpu as pltpu


def _round_up(x: int, m: int) -> int:
    return (x + m - 1) // m * m


def _vmem_budget_bytes() -> int:
    """Per-kernel VMEM budget: ~half the physical per-core capacity."""
    cap = 64 * 1024 * 1024            # conservative default (v7x per-TensorCore)
    try:
        cap = int(pltpu.get_tpu_info().vmem_capacity_bytes)
    except Exception:                 # query unavailable -> keep safe default
        pass
    return cap // 2                   # 32 MiB on v7x, 64 MiB on v5e/v6e


# --------------------------------------------------------------------------
# Fast path: whole table resident in VMEM, gather with vector loads/stores.
# --------------------------------------------------------------------------
def _vmem_table_kernel(ids_ref, table_ref, out_ref, *, tokens_per_block, scale):
    """ids_ref: full flattened id array (SMEM).
    table_ref: full (V, E) table, DMA'd into VMEM once (constant block index).
    out_ref:   (tokens_per_block, E) output tile (VMEM)."""
    base = pl.program_id(0) * tokens_per_block
    num_groups = tokens_per_block // 8            # tokens_per_block % 8 == 0

    def group_body(g, carry):
        g8 = pl.multiple_of(g * 8, 8)             # sublane-aligned output offset
        rows = [table_ref[pl.ds(ids_ref[base + g8 + k], 1), :] for k in range(8)]
        block = jnp.concatenate(rows, axis=0)     # (8, E)
        if scale != 1.0:                          # static specialization
            block = block * scale                 # fused with the gather store
        out_ref[pl.ds(g8, 8), :] = block
        return carry

    lax.fori_loop(0, num_groups, group_body, 0, unroll=2)


# --------------------------------------------------------------------------
# Fallback: table in HBM, per-row DMAs with a deep in-flight window.
# --------------------------------------------------------------------------
def _hbm_gather_kernel(ids_ref, table_ref, out_ref, copy_sems, *,
                       tokens_per_block, dma_depth, scale):
    base = pl.program_id(0) * tokens_per_block

    def start_row(row, t):
        pltpu.make_async_copy(
            table_ref.at[pl.ds(row, 1), :],
            out_ref.at[pl.ds(t, 1), :],
            copy_sems.at[t % dma_depth],
        ).start()

    def wait_row(t):
        # Dummy (row 0) source: only the destination size / semaphore matter
        # for the wait; avoids re-reading the id just to rebuild the descriptor.
        pltpu.make_async_copy(
            table_ref.at[pl.ds(0, 1), :],
            out_ref.at[pl.ds(t, 1), :],
            copy_sems.at[t % dma_depth],
        ).wait()

    # Prologue: fill the DMA window (dma_depth row copies in flight).
    for t in range(dma_depth):
        start_row(ids_ref[base + t], t)

    # Steady state: read the next id *before* the wait (a DMA wait breaks SMEM
    # store->load forwarding), retire the oldest copy, reuse its slot.
    def steady(t, carry):
        row = ids_ref[base + t]
        wait_row(t - dma_depth)
        start_row(row, t)
        return carry

    lax.fori_loop(dma_depth, tokens_per_block, steady, 0, unroll=4)

    # Scale everything already landed while the tail copies are still in
    # flight, then drain and scale the tail.
    head = tokens_per_block - dma_depth
    if scale != 1.0 and head > 0:
        out_ref[pl.ds(0, head), :] = out_ref[pl.ds(0, head), :] * scale
    for t in range(head, tokens_per_block):
        wait_row(t)
    if scale != 1.0:
        out_ref[pl.ds(head, dma_depth), :] = (
            out_ref[pl.ds(head, dma_depth), :] * scale)


# --------------------------------------------------------------------------
# Wrapper: WordEmbedding.forward(src, seg)
# --------------------------------------------------------------------------
def word_embedding_forward(src, table, seg=None, *, sinusoidalpos=False,
                           force_hbm_gather=False):
    """src: [batch, seq] int ids; table: [V, E] weights -> [batch, seq, E]."""
    del seg                                        # unused by the reference module
    B, S = src.shape
    V, E = table.shape
    dtype = table.dtype
    itemsize = jnp.dtype(dtype).itemsize
    scale = float(math.sqrt(E)) if sinusoidalpos else 1.0

    # Flatten + clamp ids (PyTorch would raise on OOB; we clamp -> valid rows).
    ids = jnp.clip(src.reshape(-1).astype(jnp.int32), 0, V - 1)
    N = int(ids.shape[0])

    budget = _vmem_budget_bytes()
    row_bytes = E * itemsize
    table_bytes = V * E * itemsize

    # Fast path if the (double-buffer-conservative) table fits the budget.
    table_in_vmem = (not force_hbm_gather) and (2 * table_bytes <= budget // 2)

    # Token tile: multiple of 8 sublanes, big enough to amortize per-step grid
    # overhead; double-buffered output tile bounded by 1/4 of the budget.
    out_budget = budget // 8
    t_cap = max(8, (out_budget // row_bytes) // 8 * 8)
    tokens_per_block = min(2048, _round_up(N, 8), t_cap)

    N_pad = _round_up(N, tokens_per_block)
    if N_pad != N:
        ids = jnp.pad(ids, (0, N_pad - N))         # pad with id 0 (valid row)
    num_blocks = N_pad // tokens_per_block

    ids_spec = pl.BlockSpec(memory_space=pltpu.MemorySpace.SMEM)
    out_spec = pl.BlockSpec((tokens_per_block, E), lambda i: (i, 0))
    compiler_params = pltpu.CompilerParams(
        dimension_semantics=("parallel",),         # shard token blocks across TCs
        vmem_limit_bytes=budget,
    )
    cost = pl.CostEstimate(
        flops=0, transcendentals=0,
        bytes_accessed=N_pad * E * itemsize
        + min(table_bytes, N_pad * E * itemsize),
    )

    if table_in_vmem:
        kernel = functools.partial(
            _vmem_table_kernel, tokens_per_block=tokens_per_block, scale=scale)
        in_specs = [ids_spec, pl.BlockSpec((V, E), lambda i: (0, 0))]
        scratch_shapes = []
    else:
        # Little's law: keep enough in-flight bytes to cover HBM latency.
        target_in_flight = 4 * 1024 * 1024
        dma_depth = min(64, tokens_per_block,
                        max(8, (target_in_flight // row_bytes) // 8 * 8))
        kernel = functools.partial(
            _hbm_gather_kernel, tokens_per_block=tokens_per_block,
            dma_depth=dma_depth, scale=scale)
        in_specs = [ids_spec, pl.BlockSpec(memory_space=pl.ANY)]
        scratch_shapes = [pltpu.SemaphoreType.DMA((dma_depth,))]

    out_flat = pl.pallas_call(
        kernel,
        out_shape=jax.ShapeDtypeStruct((N_pad, E), dtype),
        grid=(num_blocks,),
        in_specs=in_specs,
        out_specs=out_spec,
        scratch_shapes=scratch_shapes,
        compiler_params=compiler_params,
        cost_estimate=cost,
    )(ids, table)

    if N_pad != N:
        out_flat = out_flat[:N]
    return out_flat.reshape(B, S, E)


def _check(table, src, *, sinusoidalpos, force_hbm_gather=False):
    V, E = table.shape
    out = word_embedding_forward(src, table, sinusoidalpos=sinusoidalpos,
                                 force_hbm_gather=force_hbm_gather)
    out = jax.block_until_ready(out)
    ref = jnp.take(table, src, axis=0)
    if sinusoidalpos:
        ref = ref * math.sqrt(E)
    assert out.shape == ref.shape, (out.shape, ref.shape)
    assert jnp.allclose(out, ref, atol=1e-5, rtol=1e-5), "embedding mismatch"


if __name__ == "__main__":
    key = jax.random.PRNGKey(0)
    k1, k2, k3, k4 = jax.random.split(key, 4)

    # Config 1: module-spec-sized shapes (batch=2, seq=8, hidden=32, vocab=64).
    V1, E1, B1, S1 = 64, 32, 2, 8
    table1 = jax.random.normal(k1, (V1, E1), dtype=jnp.float32)
    src1 = jax.random.randint(k2, (B1, S1), 0, V1, dtype=jnp.int32)
    _check(table1, src1, sinusoidalpos=False)      # plain embedding
    _check(table1, src1, sinusoidalpos=True)       # * sqrt(emb_size)

    # Config 2: multi-group blocks, E not a multiple of 128, longer sequence.
    V2, E2, B2, S2 = 300, 96, 2, 200
    table2 = jax.random.normal(k3, (V2, E2), dtype=jnp.float32)
    src2 = jax.random.randint(k4, (B2, S2), 0, V2, dtype=jnp.int32)
    _check(table2, src2, sinusoidalpos=False)
    _check(table2, src2, sinusoidalpos=True)

    # Exercise the HBM row-gather fallback (normally used only when the table
    # exceeds the VMEM budget) on the same small shapes by forcing it.
    _check(table2, src2, sinusoidalpos=False, force_hbm_gather=True)
    _check(table2, src2, sinusoidalpos=True, force_hbm_gather=True)

    print("KERNEL_OK")
</pallas_src>

<mosaic_0001>
module attributes {stable_mosaic.version = 11 : i64} {
  func.func @_vmem_table_kernel(%arg0: i32, %arg1: memref<16xi32, #tpu.memory_space<smem>>, %arg2: memref<64x32xf32, #tpu.memory_space<vmem>>, %arg3: memref<16x32xf32, #tpu.memory_space<vmem>>) attributes {dimension_semantics = [#tpu.dimension_semantics<parallel>], iteration_bounds = array<i64: 1>, scalar_prefetch = 0 : i64, scratch_operands = 0 : i64, tpu.core_type = #tpu.core_type<tc>, window_params = [{transform_indices = @transform_0, window_bounds = array<i64: 16>}, {pipeline_mode = #tpu.pipeline_mode<synchronous>, transform_indices = @transform_1, window_bounds = array<i64: 64, 32>}, {transform_indices = @transform_2, window_bounds = array<i64: 16, 32>}]} {
    %c16_i32 = arith.constant 16 : i32
    %0 = arith.muli %arg0, %c16_i32 : i32
    %c0_i32 = arith.constant 0 : i32
    %c8_i32 = arith.constant 8 : i32
    %1 = arith.muli %c0_i32, %c8_i32 : i32
    %2 = tpu.assume_multiple %1, 8 : i32
    %3 = arith.addi %0, %2 : i32
    %c0_i32_0 = arith.constant 0 : i32
    %4 = arith.addi %3, %c0_i32_0 : i32
    %5 = arith.index_cast %4 : i32 to index
    %6 = memref.load %arg1[%5] : memref<16xi32, #tpu.memory_space<smem>>
    %7 = arith.index_cast %6 : i32 to index
    %c0 = arith.constant 0 : index
    %8 = vector.load %arg2[%7, %c0] : memref<64x32xf32, #tpu.memory_space<vmem>>, vector<1x32xf32>
    %9 = arith.addi %0, %2 : i32
    %c1_i32 = arith.constant 1 : i32
    %10 = arith.addi %9, %c1_i32 : i32
    %11 = arith.index_cast %10 : i32 to index
    %12 = memref.load %arg1[%11] : memref<16xi32, #tpu.memory_space<smem>>
    %13 = arith.index_cast %12 : i32 to index
    %c0_1 = arith.constant 0 : index
    %14 = vector.load %arg2[%13, %c0_1] : memref<64x32xf32, #tpu.memory_space<vmem>>, vector<1x32xf32>
    %15 = arith.addi %0, %2 : i32
    %c2_i32 = arith.constant 2 : i32
    %16 = arith.addi %15, %c2_i32 : i32
    %17 = arith.index_cast %16 : i32 to index
    %18 = memref.load %arg1[%17] : memref<16xi32, #tpu.memory_space<smem>>
    %19 = arith.index_cast %18 : i32 to index
    %c0_2 = arith.constant 0 : index
    %20 = vector.load %arg2[%19, %c0_2] : memref<64x32xf32, #tpu.memory_space<vmem>>, vector<1x32xf32>
    %21 = arith.addi %0, %2 : i32
    %c3_i32 = arith.constant 3 : i32
    %22 = arith.addi %21, %c3_i32 : i32
    %23 = arith.index_cast %22 : i32 to index
    %24 = memref.load %arg1[%23] : memref<16xi32, #tpu.memory_space<smem>>
    %25 = arith.index_cast %24 : i32 to index
    %c0_3 = arith.constant 0 : index
    %26 = vector.load %arg2[%25, %c0_3] : memref<64x32xf32, #tpu.memory_space<vmem>>, vector<1x32xf32>
    %27 = arith.addi %0, %2 : i32
    %c4_i32 = arith.constant 4 : i32
    %28 = arith.addi %27, %c4_i32 : i32
    %29 = arith.index_cast %28 : i32 to index
    %30 = memref.load %arg1[%29] : memref<16xi32, #tpu.memory_space<smem>>
    %31 = arith.index_cast %30 : i32 to index
    %c0_4 = arith.constant 0 : index
    %32 = vector.load %arg2[%31, %c0_4] : memref<64x32xf32, #tpu.memory_space<vmem>>, vector<1x32xf32>
    %33 = arith.addi %0, %2 : i32
    %c5_i32 = arith.constant 5 : i32
    %34 = arith.addi %33, %c5_i32 : i32
    %35 = arith.index_cast %34 : i32 to index
    %36 = memref.load %arg1[%35] : memref<16xi32, #tpu.memory_space<smem>>
    %37 = arith.index_cast %36 : i32 to index
    %c0_5 = arith.constant 0 : index
    %38 = vector.load %arg2[%37, %c0_5] : memref<64x32xf32, #tpu.memory_space<vmem>>, vector<1x32xf32>
    %39 = arith.addi %0, %2 : i32
    %c6_i32 = arith.constant 6 : i32
    %40 = arith.addi %39, %c6_i32 : i32
    %41 = arith.index_cast %40 : i32 to index
    %42 = memref.load %arg1[%41] : memref<16xi32, #tpu.memory_space<smem>>
    %43 = arith.index_cast %42 : i32 to index
    %c0_6 = arith.constant 0 : index
    %44 = vector.load %arg2[%43, %c0_6] : memref<64x32xf32, #tpu.memory_space<vmem>>, vector<1x32xf32>
    %45 = arith.addi %0, %2 : i32
    %c7_i32 = arith.constant 7 : i32
    %46 = arith.addi %45, %c7_i32 : i32
    %47 = arith.index_cast %46 : i32 to index
    %48 = memref.load %arg1[%47] : memref<16xi32, #tpu.memory_space<smem>>
    %49 = arith.index_cast %48 : i32 to index
    %c0_7 = arith.constant 0 : index
    %50 = vector.load %arg2[%49, %c0_7] : memref<64x32xf32, #tpu.memory_space<vmem>>, vector<1x32xf32>
    %51 = tpu.concatenate %8, %14, %20, %26, %32, %38, %44, %50 in 0 : vector<1x32xf32>, vector<1x32xf32>, vector<1x32xf32>, vector<1x32xf32>, vector<1x32xf32>, vector<1x32xf32>, vector<1x32xf32>, vector<1x32xf32> -> vector<8x32xf32>
    %52 = arith.index_cast %2 : i32 to index
    %c0_8 = arith.constant 0 : index
    %53 = vector.load %arg3[%52, %c0_8] : memref<16x32xf32, #tpu.memory_space<vmem>>, vector<8x32xf32>
    tpu.vector_store %arg3[%52, %c0_8], %51 {strides = array<i32>} : memref<16x32xf32, #tpu.memory_space<vmem>>, vector<8x32xf32>,
    %c1_i32_9 = arith.constant 1 : i32
    %c8_i32_10 = arith.constant 8 : i32
    %54 = arith.muli %c1_i32_9, %c8_i32_10 : i32
    %55 = tpu.assume_multiple %54, 8 : i32
    %56 = arith.addi %0, %55 : i32
    %c0_i32_11 = arith.constant 0 : i32
    %57 = arith.addi %56, %c0_i32_11 : i32
    %58 = arith.index_cast %57 : i32 to index
    %59 = memref.load %arg1[%58] : memref<16xi32, #tpu.memory_space<smem>>
    %60 = arith.index_cast %59 : i32 to index
    %c0_12 = arith.constant 0 : index
    %61 = vector.load %arg2[%60, %c0_12] : memref<64x32xf32, #tpu.memory_space<vmem>>, vector<1x32xf32>
    %62 = arith.addi %0, %55 : i32
    %c1_i32_13 = arith.constant 1 : i32
    %63 = arith.addi %62, %c1_i32_13 : i32
    %64 = arith.index_cast %63 : i32 to index
    %65 = memref.load %arg1[%64] : memref<16xi32, #tpu.memory_space<smem>>
    %66 = arith.index_cast %65 : i32 to index
    %c0_14 = arith.constant 0 : index
    %67 = vector.load %arg2[%66, %c0_14] : memref<64x32xf32, #tpu.memory_space<vmem>>, vector<1x32xf32>
    %68 = arith.addi %0, %55 : i32
    %c2_i32_15 = arith.constant 2 : i32
    %69 = arith.addi %68, %c2_i32_15 : i32
    %70 = arith.index_cast %69 : i32 to index
    %71 = memref.load %arg1[%70] : memref<16xi32, #tpu.memory_space<smem>>
    %72 = arith.index_cast %71 : i32 to index
    %c0_16 = arith.constant 0 : index
    %73 = vector.load %arg2[%72, %c0_16] : memref<64x32xf32, #tpu.memory_space<vmem>>, vector<1x32xf32>
    %74 = arith.addi %0, %55 : i32
    %c3_i32_17 = arith.constant 3 : i32
    %75 = arith.addi %74, %c3_i32_17 : i32
    %76 = arith.index_cast %75 : i32 to index
    %77 = memref.load %arg1[%76] : memref<16xi32, #tpu.memory_space<smem>>
    %78 = arith.index_cast %77 : i32 to index
    %c0_18 = arith.constant 0 : index
    %79 = vector.load %arg2[%78, %c0_18] : memref<64x32xf32, #tpu.memory_space<vmem>>, vector<1x32xf32>
    %80 = arith.addi %0, %55 : i32
    %c4_i32_19 = arith.constant 4 : i32
    %81 = arith.addi %80, %c4_i32_19 : i32
    %82 = arith.index_cast %81 : i32 to index
    %83 = memref.load %arg1[%82] : memref<16xi32, #tpu.memory_space<smem>>
    %84 = arith.index_cast %83 : i32 to index
    %c0_20 = arith.constant 0 : index
    %85 = vector.load %arg2[%84, %c0_20] : memref<64x32xf32, #tpu.memory_space<vmem>>, vector<1x32xf32>
    %86 = arith.addi %0, %55 : i32
    %c5_i32_21 = arith.constant 5 : i32
    %87 = arith.addi %86, %c5_i32_21 : i32
    %88 = arith.index_cast %87 : i32 to index
    %89 = memref.load %arg1[%88] : memref<16xi32, #tpu.memory_space<smem>>
    %90 = arith.index_cast %89 : i32 to index
    %c0_22 = arith.constant 0 : index
    %91 = vector.load %arg2[%90, %c0_22] : memref<64x32xf32, #tpu.memory_space<vmem>>, vector<1x32xf32>
    %92 = arith.addi %0, %55 : i32
    %c6_i32_23 = arith.constant 6 : i32
    %93 = arith.addi %92, %c6_i32_23 : i32
    %94 = arith.index_cast %93 : i32 to index
    %95 = memref.load %arg1[%94] : memref<16xi32, #tpu.memory_space<smem>>
    %96 = arith.index_cast %95 : i32 to index
    %c0_24 = arith.constant 0 : index
    %97 = vector.load %arg2[%96, %c0_24] : memref<64x32xf32, #tpu.memory_space<vmem>>, vector<1x32xf32>
    %98 = arith.addi %0, %55 : i32
    %c7_i32_25 = arith.constant 7 : i32
    %99 = arith.addi %98, %c7_i32_25 : i32
    %100 = arith.index_cast %99 : i32 to index
    %101 = memref.load %arg1[%100] : memref<16xi32, #tpu.memory_space<smem>>
    %102 = arith.index_cast %101 : i32 to index
    %c0_26 = arith.constant 0 : index
    %103 = vector.load %arg2[%102, %c0_26] : memref<64x32xf32, #tpu.memory_space<vmem>>, vector<1x32xf32>
    %104 = tpu.concatenate %61, %67, %73, %79, %85, %91, %97, %103 in 0 : vector<1x32xf32>, vector<1x32xf32>, vector<1x32xf32>, vector<1x32xf32>, vector<1x32xf32>, vector<1x32xf32>, vector<1x32xf32>, vector<1x32xf32> -> vector<8x32xf32>
    %105 = arith.index_cast %55 : i32 to index
    %c0_27 = arith.constant 0 : index
    %106 = vector.load %arg3[%105, %c0_27] : memref<16x32xf32, #tpu.memory_space<vmem>>, vector<8x32xf32>
    tpu.vector_store %arg3[%105, %c0_27], %104 {strides = array<i32>} : memref<16x32xf32, #tpu.memory_space<vmem>>, vector<8x32xf32>,
    %c2_i32_28 = arith.constant 2 : i32
    return
  }
  func.func @transform_0(%arg0: i32) -> i32 {
    %c0_i32 = arith.constant 0 : i32
    %c0_i32_0 = arith.constant 0 : i32
    return %c0_i32 : i32
  }
  func.func @transform_1(%arg0: i32) -> (i32, i32) {
    %c0_i32 = arith.constant 0 : i32
    %c0_i32_0 = arith.constant 0 : i32
    %c0_i32_1 = arith.constant 0 : i32
    return %c0_i32, %c0_i32_0 : i32, i32
  }
  func.func @transform_2(%arg0: i32) -> (i32, i32) {
    %c0_i32 = arith.constant 0 : i32
    %c0_i32_0 = arith.constant 0 : i32
    return %arg0, %c0_i32 : i32, i32
  }
}

</mosaic_0001>

<llo_original>
// kernel: tpu_custom_call.1
$region0: #{tpu_custom_call.1}
  #allocation0 [shape = 'u32[]', space=smem, size = 0x4, offset = 0x4, fixed_abs, tag = 'smem constant byte address 0x4 - core index']
  #allocation1 [shape = 'u32[144,128]{1,0:T(1,128)}', space=vmem, size = 0x12000, scoped, tag = 'internal scratch']
  %s0 = inlined_call_operand.vmem [shape: s32[16], index: 0, kind: input, shape index: {}]
  %s1 = inlined_call_operand.vmem [shape: f32[64,32], index: 1, kind: input, shape index: {}]
  %s2 = inlined_call_operand.hbm [shape: f32[16,32], index: 2, kind: output, shape index: {}]
  %s3 = sld [smem:[#allocation0]]
  $region22: #{tpu_custom_call.1} parent=0
    _
  %s5 = ssub.s32 1, %s3
  %s6 = scalar_select 0, %s5, %s3
  $region1: #{tpu_custom_call.1} parent=0
    #allocation2 [shape = 'u8[512]{0}', space=smem, size = 0x200, scoped, tag = 'input window, operand 0, single buffered']
    #allocation3 [shape = 's32[1]{0}', space=sflag, size = 0x4, scoped, tag = 'scoped memory for tpu_custom_call.1']
    #allocation4 [shape = 's32[1]{0}', space=sflag, size = 0x4, scoped, tag = 'scoped memory for tpu_custom_call.1']
    #allocation5 [shape = 'u8[8192]{0}', space=vmem, size = 0x2000, scoped, tag = 'output window, operand 0, single buffered']
    %7 = vsyncpa [#allocation4], 0
    %8 = vsyncpa [#allocation3], 0
    // Predicated region
    $region2: #{tpu_custom_call.1} parent=1 // pred_check
      _
    $region3: #{tpu_custom_call.1} parent=1 // pred_check_branch
      %10 = sbr.rel (0) target = $region5
    $region4: #{tpu_custom_call.1} parent=1 // pred_region
      %s12 = ssub.s32 16, 16
      %13 = vsyncadd [#allocation4], %s12
      %s15 = sshll.u32 %s0, 4
      %s16 = int_to_ptr.vmem [resolvable:$true] %s15
      %18 = dma.vmem_to_smem %s16, 16, [#allocation2], [#allocation4]
    $region5: #{tpu_custom_call.1} parent=1 // pred_fallthru
      _
    // Predicated region
    $region6: #{tpu_custom_call.1} parent=1 // pred_check
      _
    $region7: #{tpu_custom_call.1} parent=1 // pred_check_branch
      %20 = sbr.rel (0) target = $region9
    $region8: #{tpu_custom_call.1} parent=1 // pred_region
      _
    $region9: #{tpu_custom_call.1} parent=1 // pred_fallthru
      _
    // Predicated region
    $region10: #{tpu_custom_call.1} parent=1 // pred_check
      _
    $region11: #{tpu_custom_call.1} parent=1 // pred_check_branch
      %22 = sbr.rel (0) target = $region13
    $region12: #{tpu_custom_call.1} parent=1 // pred_region
      %23 = dma.done [#allocation4], 16
    $region13: #{tpu_custom_call.1} parent=1 // pred_fallthru
      _
    %24 = sfence
    %s25 = smul.u32 0, 16
    %s26 = sadd.s32 %s25, 0
    %s27 = sld [smem:[#allocation2 + %s26]]
    %s28 = scalar_lea.vmem %s1, %s27
    %v29 = vld [vmem:[%s28] sm:$0x1]
    %s30 = sadd.s32 %s26, 1
    %s31 = sld [smem:[#allocation2 + %s30]]
    %s32 = scalar_lea.vmem %s1, %s31
    %v33 = vld [vmem:[%s32] sm:$0x1]
    %s34 = sadd.s32 %s26, 2
    %s35 = sld [smem:[#allocation2 + %s34]]
    %s36 = scalar_lea.vmem %s1, %s35
    %v37 = vld [vmem:[%s36] sm:$0x1]
    %s38 = sadd.s32 %s26, 3
    %s39 = sld [smem:[#allocation2 + %s38]]
    %s40 = scalar_lea.vmem %s1, %s39
    %v41 = vld [vmem:[%s40] sm:$0x1]
    %s42 = sadd.s32 %s26, 4
    %s43 = sld [smem:[#allocation2 + %s42]]
    %s44 = scalar_lea.vmem %s1, %s43
    %v45 = vld [vmem:[%s44] sm:$0x1]
    %s46 = sadd.s32 %s26, 5
    %s47 = sld [smem:[#allocation2 + %s46]]
    %s48 = scalar_lea.vmem %s1, %s47
    %v49 = vld [vmem:[%s48] sm:$0x1]
    %s50 = sadd.s32 %s26, 6
    %s51 = sld [smem:[#allocation2 + %s50]]
    %s52 = scalar_lea.vmem %s1, %s51
    %v53 = vld [vmem:[%s52] sm:$0x1]
    %s54 = sadd.s32 %s26, 7
    %s55 = sld [smem:[#allocation2 + %s54]]
    %s56 = scalar_lea.vmem %s1, %s55
    %v57 = vld [vmem:[%s56] sm:$0x1]
    %v59 = vrot.slane %v33, 7
    %v62 = vrot.slane %v37, 6
    %v65 = vrot.slane %v41, 5
    %v68 = vrot.slane %v45, 4
    %v71 = vrot.slane %v49, 3
    %v74 = vrot.slane %v53, 2
    %v77 = vrot.slane %v57, 1
    %vm79 = vcmask 1040384
    %v80 = vsel %vm79, %v29, %v59
    %vm81 = vcmask 1041408
    %v82 = vsel %vm81, %v80, %v62
    %vm83 = vcmask 1042432
    %v84 = vsel %vm83, %v82, %v65
    %vm85 = vcmask 1043456
    %v86 = vsel %vm85, %v84, %v68
    %vm87 = vcmask 1044480
    %v88 = vsel %vm87, %v86, %v71
    %vm89 = vcmask 1045504
    %v90 = vsel %vm89, %v88, %v74
    %vm91 = vcmask 1046528
    %v92 = vsel %vm91, %v90, %v77
    %vm93 = vcmask 261120
    %94 = vst.msk [vmem:[#allocation5] sm:$0xff] %vm93, %v92
    %s95 = sadd.s32 %s25, 8
    %s96 = sld [smem:[#allocation2 + %s95]]
    %s97 = scalar_lea.vmem %s1, %s96
    %v98 = vld [vmem:[%s97] sm:$0x1]
    %s99 = sadd.s32 %s95, 1
    %s100 = sld [smem:[#allocation2 + %s99]]
    %s101 = scalar_lea.vmem %s1, %s100
    %v102 = vld [vmem:[%s101] sm:$0x1]
    %s103 = sadd.s32 %s95, 2
    %s104 = sld [smem:[#allocation2 + %s103]]
    %s105 = scalar_lea.vmem %s1, %s104
    %v106 = vld [vmem:[%s105] sm:$0x1]
    %s107 = sadd.s32 %s95, 3
    %s108 = sld [smem:[#allocation2 + %s107]]
    %s109 = scalar_lea.vmem %s1, %s108
    %v110 = vld [vmem:[%s109] sm:$0x1]
    %s111 = sadd.s32 %s95, 4
    %s112 = sld [smem:[#allocation2 + %s111]]
    %s113 = scalar_lea.vmem %s1, %s112
    %v114 = vld [vmem:[%s113] sm:$0x1]
    %s115 = sadd.s32 %s95, 5
    %s116 = sld [smem:[#allocation2 + %s115]]
    %s117 = scalar_lea.vmem %s1, %s116
    %v118 = vld [vmem:[%s117] sm:$0x1]
    %s119 = sadd.s32 %s95, 6
    %s120 = sld [smem:[#allocation2 + %s119]]
    %s121 = scalar_lea.vmem %s1, %s120
    %v122 = vld [vmem:[%s121] sm:$0x1]
    %s123 = sadd.s32 %s95, 7
    %s124 = sld [smem:[#allocation2 + %s123]]
    %s125 = scalar_lea.vmem %s1, %s124
    %v126 = vld [vmem:[%s125] sm:$0x1]
    %v128 = vrot.slane %v102, 7
    %v131 = vrot.slane %v106, 6
    %v134 = vrot.slane %v110, 5
    %v137 = vrot.slane %v114, 4
    %v140 = vrot.slane %v118, 3
    %v143 = vrot.slane %v122, 2
    %v146 = vrot.slane %v126, 1
    %v148 = vsel %vm79, %v98, %v128
    %v149 = vsel %vm81, %v148, %v131
    %v150 = vsel %vm83, %v149, %v134
    %v151 = vsel %vm85, %v150, %v137
    %v152 = vsel %vm87, %v151, %v140
    %v153 = vsel %vm89, %v152, %v143
    %v154 = vsel %vm91, %v153, %v146
    %s155 = scalar_lea.vmem [#allocation5], 8
    %156 = vst.msk [vmem:[%s155] sm:$0xff] %vm93, %v154
    // Predicated region
    $region14: #{tpu_custom_call.1} parent=1 // pred_check
      _
    $region15: #{tpu_custom_call.1} parent=1 // pred_check_branch
      %158 = sbr.rel (0) target = $region17
    $region16: #{tpu_custom_call.1} parent=1 // pred_region
      %s160 = ssub.s32 256, 256
      %161 = vsyncadd [#allocation3], %s160
      %s162 = sshll.u32 [#allocation5], 4
      %s163 = int_to_ptr.vmem [resolvable:$true] %s162
      %168 = dma.vmem_to_hbm [thread:$0]  %s163, 256, %s2, [#allocation3], 128, 128, 8
    $region17: #{tpu_custom_call.1} parent=1 // pred_fallthru
      _
    // Predicated region
    $region18: #{tpu_custom_call.1} parent=1 // pred_check
      _
    $region19: #{tpu_custom_call.1} parent=1 // pred_check_branch
      %170 = sbr.rel (0) target = $region21
    $region20: #{tpu_custom_call.1} parent=1 // pred_region
      %171 = dma.done [#allocation3], 256
    $region21: #{tpu_custom_call.1} parent=1 // pred_fallthru
      _
    %172 = vsyncpa [#allocation3], 1
    %173 = vsyncpa [#allocation4], 1

</llo_original>
